<compile_context>
chip_gen: v6e
topology: v6e:2x2x1
jax: 0.10.0
libtpu: 0.0.40
codegen_flags: <defaults>
</compile_context>

<pallas_src>
import jax
import jax.numpy as jnp
from jax.experimental import pallas as pl
from jax.experimental.pallas import tpu as pltpu


def _tm_linear_kernel(z_ref, w_ref, b_ref, o_ref):
    # z_ref: (tm, REP*c_z)  w_ref: (REP*c_z, REP*no_bins)  b_ref: (1, REP*no_bins)
    # o_ref: (tm, REP*no_bins)  -- lane-dense, unmasked vst
    acc = jnp.dot(z_ref[...], w_ref[...], preferred_element_type=jnp.float32)
    o_ref[...] = (acc + b_ref[...].astype(jnp.float32)).astype(o_ref.dtype)


def tm_score_head_forward(z, weight, bias, *, tm_rows=32768,
                          vmem_limit_bytes=48 << 20):
    """
    Args:
        z:      [*, N_res, N_res, c_z]  pairwise embedding
        weight: [no_bins, c_z]          (PyTorch nn.Linear layout)
        bias:   [no_bins]
    Returns:
        [*, N_res, N_res, no_bins]
    """
    *lead, c_z = z.shape
    no_bins = weight.shape[0]
    M = 1
    for d in lead:
        M *= d

    # Replication factor: make the input rows 128 lanes wide when possible.
    REP = 128 // c_z if (c_z <= 128 and 128 % c_z == 0) else 1

    z2d = z.reshape(M, c_z)
    w_t = weight.T                                # (c_z, no_bins)
    out_dtype = z.dtype

    # Pad M to a multiple of REP (padded rows are discarded after the call).
    M_pad = ((M + REP - 1) // REP) * REP
    if M_pad != M:
        z2d = jnp.pad(z2d, ((0, M_pad - M), (0, 0)))
    Mp = M_pad // REP                             # packed row count

    if REP > 1:
        # Lane-dense layout: row-major reshapes are no-ops; the block-diagonal
        # weight routes each packed sub-row through its own copy of W^T.
        z_packed = z2d.reshape(Mp, REP * c_z)
        w_bd = jnp.kron(jnp.eye(REP, dtype=w_t.dtype), w_t)   # (REP*c_z, REP*no_bins)
        b_row = jnp.tile(bias, REP).reshape(1, REP * no_bins)
    else:
        z_packed = z2d
        w_bd = w_t
        b_row = bias.reshape(1, no_bins)

    kin = REP * c_z
    nout = REP * no_bins

    # Packed-row tile: big, multiple of 8; ragged last block handled by cdiv.
    tm_packed = max(8, ((tm_rows // REP + 7) // 8) * 8)
    if Mp <= tm_packed:
        tm_eff = Mp                               # block == full dim is always legal
        grid = (1,)
    else:
        tm_eff = tm_packed
        grid = (pl.cdiv(Mp, tm_eff),)

    in_bytes = jnp.dtype(z.dtype).itemsize
    out_bytes = jnp.dtype(out_dtype).itemsize
    cost = pl.CostEstimate(
        flops=2 * Mp * kin * nout,
        transcendentals=0,
        bytes_accessed=(Mp * kin * in_bytes
                        + Mp * nout * out_bytes
                        + kin * nout * jnp.dtype(w_bd.dtype).itemsize
                        + nout * jnp.dtype(bias.dtype).itemsize),
    )

    out_packed = pl.pallas_call(
        _tm_linear_kernel,
        out_shape=jax.ShapeDtypeStruct((Mp, nout), out_dtype),
        grid_spec=pltpu.PrefetchScalarGridSpec(
            num_scalar_prefetch=0,
            grid=grid,
            in_specs=[
                pl.BlockSpec((tm_eff, kin), lambda i: (i, 0)),
                pl.BlockSpec((kin, nout), lambda i: (0, 0)),   # VMEM-resident
                pl.BlockSpec((1, nout), lambda i: (0, 0)),     # VMEM-resident
            ],
            out_specs=pl.BlockSpec((tm_eff, nout), lambda i: (i, 0)),
        ),
        compiler_params=pltpu.CompilerParams(
            dimension_semantics=("parallel",),     # lets v7x split steps over 2 TCs
            vmem_limit_bytes=vmem_limit_bytes,     # big lane-dense tiles fit well within this
        ),
        cost_estimate=cost,
    )(z_packed, w_bd, b_row)

    # Row-major reshape back (no-op layout-wise), drop padded rows.
    out2d = out_packed.reshape(M_pad, no_bins)[:M]
    return out2d.reshape(*lead, no_bins)


if __name__ == "__main__":
    # Small shapes consistent with the module: batch=2, N_res=8, c_z=32, no_bins=64
    B, N, C_Z, NO_BINS = 2, 8, 32, 64

    key = jax.random.PRNGKey(0)
    k_z, k_b, k_w, k_z2 = jax.random.split(key, 4)

    z = jax.random.normal(k_z, (B, N, N, C_Z), dtype=jnp.float32)

    bound = 1.0 / (C_Z ** 0.5)
    bias = jax.random.uniform(k_b, (NO_BINS,), minval=-bound, maxval=bound,
                              dtype=jnp.float32)

    # Case 1: module init (weight zero-filled per TMScoreHead.__init__).
    weight_init = jnp.zeros((NO_BINS, C_Z), dtype=jnp.float32)
    logits = jax.block_until_ready(tm_score_head_forward(z, weight_init, bias))
    ref = jnp.einsum("bijc,oc->bijo", z, weight_init) + bias
    assert logits.shape == (B, N, N, NO_BINS)
    assert jnp.allclose(logits, ref, atol=1e-5, rtol=1e-5)

    # Case 2: dense (trained-like) weight to exercise the matmul path.
    weight_dense = jax.random.normal(k_w, (NO_BINS, C_Z), dtype=jnp.float32) * bound
    logits2 = jax.block_until_ready(tm_score_head_forward(z, weight_dense, bias))
    ref2 = jnp.einsum("bijc,oc->bijo", z, weight_dense) + bias
    assert jnp.allclose(logits2, ref2, atol=1e-5, rtol=1e-5)

    # Case 3: row count not a multiple of REP (exercise padding path).
    z_odd = jax.random.normal(k_z2, (3, 5, 5, C_Z), dtype=jnp.float32)
    logits3 = jax.block_until_ready(tm_score_head_forward(z_odd, weight_dense, bias))
    ref3 = jnp.einsum("bijc,oc->bijo", z_odd, weight_dense) + bias
    assert logits3.shape == (3, 5, 5, NO_BINS)
    assert jnp.allclose(logits3, ref3, atol=1e-5, rtol=1e-5)

    # Case 4: force a multi-step grid with a ragged-friendly tiny tile.
    logits4 = jax.block_until_ready(
        tm_score_head_forward(z, weight_dense, bias, tm_rows=64))
    assert jnp.allclose(logits4, ref2, atol=1e-5, rtol=1e-5)

    print("KERNEL_OK")
</pallas_src>

<mosaic_0001>
module attributes {stable_mosaic.version = 11 : i64} {
  func.func @_tm_linear_kernel(%arg0: i32, %arg1: memref<32x128xf32, #tpu.memory_space<vmem>>, %arg2: memref<128x256xf32, #tpu.memory_space<vmem>>, %arg3: memref<1x256xf32, #tpu.memory_space<vmem>>, %arg4: memref<32x256xf32, #tpu.memory_space<vmem>>) attributes {dimension_semantics = [#tpu.dimension_semantics<parallel>], iteration_bounds = array<i64: 1>, scalar_prefetch = 0 : i64, scratch_operands = 0 : i64, tpu.core_type = #tpu.core_type<tc>, window_params = [{transform_indices = @transform_0, window_bounds = array<i64: 32, 128>}, {pipeline_mode = #tpu.pipeline_mode<synchronous>, transform_indices = @transform_1, window_bounds = array<i64: 128, 256>}, {pipeline_mode = #tpu.pipeline_mode<synchronous>, transform_indices = @transform_2, window_bounds = array<i64: 1, 256>}, {transform_indices = @transform_3, window_bounds = array<i64: 32, 256>}]} {
    %c0 = arith.constant 0 : index
    %c0_0 = arith.constant 0 : index
    %0 = vector.load %arg1[%c0, %c0_0] : memref<32x128xf32, #tpu.memory_space<vmem>>, vector<32x128xf32>
    %c0_1 = arith.constant 0 : index
    %c0_2 = arith.constant 0 : index
    %1 = vector.load %arg2[%c0_1, %c0_2] : memref<128x256xf32, #tpu.memory_space<vmem>>, vector<128x256xf32>
    %cst = arith.constant dense<0.000000e+00> : vector<32x256xf32>
    %2 = tpu.matmul %0, %1, %cst {dimension_numbers = #tpu.dot_dimension_numbers<[1], [0], [0], [1], [0, 0, 1, 1], [], []>} : vector<32x128xf32>, vector<128x256xf32>, vector<32x256xf32> -> vector<32x256xf32>
    %c0_3 = arith.constant 0 : index
    %c0_4 = arith.constant 0 : index
    %3 = vector.load %arg3[%c0_3, %c0_4] : memref<1x256xf32, #tpu.memory_space<vmem>>, vector<1x256xf32>
    %4 = vector.broadcast %3 : vector<1x256xf32> to vector<32x256xf32>
    %5 = arith.addf %2, %4 : vector<32x256xf32>
    %c0_5 = arith.constant 0 : index
    %c0_6 = arith.constant 0 : index
    %6 = vector.load %arg4[%c0_5, %c0_6] : memref<32x256xf32, #tpu.memory_space<vmem>>, vector<32x256xf32>
    tpu.vector_store %arg4[%c0_5, %c0_6], %5 {strides = array<i32>} : memref<32x256xf32, #tpu.memory_space<vmem>>, vector<32x256xf32>,
    return
  }
  func.func @transform_0(%arg0: i32) -> (i32, i32) {
    %c0_i32 = arith.constant 0 : i32
    %c0_i32_0 = arith.constant 0 : i32
    return %arg0, %c0_i32 : i32, i32
  }
  func.func @transform_1(%arg0: i32) -> (i32, i32) {
    %c0_i32 = arith.constant 0 : i32
    %c0_i32_0 = arith.constant 0 : i32
    %c0_i32_1 = arith.constant 0 : i32
    return %c0_i32, %c0_i32_0 : i32, i32
  }
  func.func @transform_2(%arg0: i32) -> (i32, i32) {
    %c0_i32 = arith.constant 0 : i32
    %c0_i32_0 = arith.constant 0 : i32
    %c0_i32_1 = arith.constant 0 : i32
    return %c0_i32, %c0_i32_0 : i32, i32
  }
  func.func @transform_3(%arg0: i32) -> (i32, i32) {
    %c0_i32 = arith.constant 0 : i32
    %c0_i32_0 = arith.constant 0 : i32
    return %arg0, %c0_i32 : i32, i32
  }
}

</mosaic_0001>

<llo_original>
// kernel: tpu_custom_call.1
$region0: #{tpu_custom_call.1}
  #allocation0 [shape = 'u32[]', space=smem, size = 0x4, offset = 0x4, fixed_abs, tag = 'smem constant byte address 0x4 - core index']
  #allocation1 [shape = 'u32[144,128]{1,0:T(1,128)}', space=vmem, size = 0x12000, scoped, tag = 'internal scratch']
  %s0 = inlined_call_operand.hbm [shape: f32[32,128], index: 0, kind: input, shape index: {}]
  %s1 = inlined_call_operand.hbm [shape: f32[128,256], index: 1, kind: input, shape index: {}]
  %s2 = inlined_call_operand.vmem [shape: f32[1,256], index: 2, kind: input, shape index: {}]
  %s3 = inlined_call_operand.hbm [shape: f32[32,256], index: 3, kind: output, shape index: {}]
  %s4 = sld [smem:[#allocation0]]
  $region30: #{tpu_custom_call.1} parent=0
    _
  %s6 = ssub.s32 1, %s4
  %s7 = scalar_select 0, %s6, %s4
  $region1: #{tpu_custom_call.1} parent=0
    #allocation2 [shape = 'u8[16384]{0}', space=vmem, size = 0x4000, scoped, tag = 'input window, operand 0, single buffered']
    #allocation3 [shape = 's32[1]{0}', space=sflag, size = 0x4, scoped, tag = 'scoped memory for tpu_custom_call.1']
    #allocation4 [shape = 's32[1]{0}', space=sflag, size = 0x4, scoped, tag = 'scoped memory for tpu_custom_call.1']
    #allocation5 [shape = 'u8[131072]{0}', space=vmem, size = 0x20000, scoped, tag = 'input window, operand 1, single buffered']
    #allocation6 [shape = 's32[1]{0}', space=sflag, size = 0x4, scoped, tag = 'scoped memory for tpu_custom_call.1']
    #allocation7 [shape = 'u8[32768]{0}', space=vmem, size = 0x8000, scoped, tag = 'output window, operand 0, single buffered']
    %8 = vsyncpa [#allocation3], 0
    %9 = vsyncpa [#allocation6], 0
    %10 = vsyncpa [#allocation4], 0
    // Predicated region
    $region2: #{tpu_custom_call.1} parent=1 // pred_check
      _
    $region3: #{tpu_custom_call.1} parent=1 // pred_check_branch
      %12 = sbr.rel (0) target = $region5
    $region4: #{tpu_custom_call.1} parent=1 // pred_region
      %s14 = ssub.s32 512, 512
      %15 = vsyncadd [#allocation3], %s14
      %s16 = sshll.u32 [#allocation2], 4
      %s17 = int_to_ptr.vmem [resolvable:$true] %s16
      %22 = dma.hbm_to_vmem [thread:$0]  %s0, 512, %s17, [#allocation3], 128, 128, 8
    $region5: #{tpu_custom_call.1} parent=1 // pred_fallthru
      _
    // Predicated region
    $region6: #{tpu_custom_call.1} parent=1 // pred_check
      _
    $region7: #{tpu_custom_call.1} parent=1 // pred_check_branch
      %24 = sbr.rel (0) target = $region9
    $region8: #{tpu_custom_call.1} parent=1 // pred_region
      %s26 = ssub.s32 4096, 4096
      %27 = vsyncadd [#allocation6], %s26
      %s28 = sshll.u32 [#allocation5], 4
      %s29 = int_to_ptr.vmem [resolvable:$true] %s28
      %34 = dma.hbm_to_vmem [thread:$0]  %s1, 4096, %s29, [#allocation6], 256, 256, 16
    $region9: #{tpu_custom_call.1} parent=1 // pred_fallthru
      _
    // Predicated region
    $region10: #{tpu_custom_call.1} parent=1 // pred_check
      _
    $region11: #{tpu_custom_call.1} parent=1 // pred_check_branch
      %36 = sbr.rel (0) target = $region13
    $region12: #{tpu_custom_call.1} parent=1 // pred_region
      _
    $region13: #{tpu_custom_call.1} parent=1 // pred_fallthru
      _
    // Predicated region
    $region14: #{tpu_custom_call.1} parent=1 // pred_check
      _
    $region15: #{tpu_custom_call.1} parent=1 // pred_check_branch
      %38 = sbr.rel (0) target = $region17
    $region16: #{tpu_custom_call.1} parent=1 // pred_region
      %39 = dma.done [#allocation3], 512
    $region17: #{tpu_custom_call.1} parent=1 // pred_fallthru
      _
    // Predicated region
    $region18: #{tpu_custom_call.1} parent=1 // pred_check
      _
    $region19: #{tpu_custom_call.1} parent=1 // pred_check_branch
      %41 = sbr.rel (0) target = $region21
    $region20: #{tpu_custom_call.1} parent=1 // pred_region
      %42 = dma.done [#allocation6], 4096
    $region21: #{tpu_custom_call.1} parent=1 // pred_fallthru
      _
    %v43 = vld [vmem:[#allocation2] sm:$0xff]
    %v44 = vld [vmem:[#allocation2 + $0x8] sm:$0xff]
    %v45 = vld [vmem:[#allocation2 + $0x10] sm:$0xff]
    %v46 = vld [vmem:[#allocation2 + $0x18] sm:$0xff]
    %v47 = vld [vmem:[#allocation5] sm:$0xff]
    %v48 = vld [vmem:[#allocation5 + $0x8] sm:$0xff]
    %v49 = vld [vmem:[#allocation5 + $0x10] sm:$0xff]
    %v50 = vld [vmem:[#allocation5 + $0x18] sm:$0xff]
    %v51 = vld [vmem:[#allocation5 + $0x20] sm:$0xff]
    %v52 = vld [vmem:[#allocation5 + $0x28] sm:$0xff]
    %v53 = vld [vmem:[#allocation5 + $0x30] sm:$0xff]
    %v54 = vld [vmem:[#allocation5 + $0x38] sm:$0xff]
    %v55 = vld [vmem:[#allocation5 + $0x40] sm:$0xff]
    %v56 = vld [vmem:[#allocation5 + $0x48] sm:$0xff]
    %v57 = vld [vmem:[#allocation5 + $0x50] sm:$0xff]
    %v58 = vld [vmem:[#allocation5 + $0x58] sm:$0xff]
    %v59 = vld [vmem:[#allocation5 + $0x60] sm:$0xff]
    %v60 = vld [vmem:[#allocation5 + $0x68] sm:$0xff]
    %v61 = vld [vmem:[#allocation5 + $0x70] sm:$0xff]
    %v62 = vld [vmem:[#allocation5 + $0x78] sm:$0xff]
    %v63 = vld [vmem:[#allocation5 + $0x80] sm:$0xff]
    %v64 = vld [vmem:[#allocation5 + $0x88] sm:$0xff]
    %v65 = vld [vmem:[#allocation5 + $0x90] sm:$0xff]
    %v66 = vld [vmem:[#allocation5 + $0x98] sm:$0xff]
    %v67 = vld [vmem:[#allocation5 + $0xa0] sm:$0xff]
    %v68 = vld [vmem:[#allocation5 + $0xa8] sm:$0xff]
    %v69 = vld [vmem:[#allocation5 + $0xb0] sm:$0xff]
    %v70 = vld [vmem:[#allocation5 + $0xb8] sm:$0xff]
    %v71 = vld [vmem:[#allocation5 + $0xc0] sm:$0xff]
    %v72 = vld [vmem:[#allocation5 + $0xc8] sm:$0xff]
    %v73 = vld [vmem:[#allocation5 + $0xd0] sm:$0xff]
    %v74 = vld [vmem:[#allocation5 + $0xd8] sm:$0xff]
    %v75 = vld [vmem:[#allocation5 + $0xe0] sm:$0xff]
    %v76 = vld [vmem:[#allocation5 + $0xe8] sm:$0xff]
    %v77 = vld [vmem:[#allocation5 + $0xf0] sm:$0xff]
    %v78 = vld [vmem:[#allocation5 + $0xf8] sm:$0xff]
    %v79 = vld [vmem:[%s2] sm:$0x3]
    %v81 = vlaneseq
    %v82 = vshrl.u32 %v81, 7
    %v83 = vsub.s32 0, %v82
    %v84 = vrot.slane %v79, %v83
    %v85 = vlaneseq
    %v86 = vshrl.u32 %v85, 7
    %v87 = vsub.s32 1, %v86
    %v88 = vrot.slane %v79, %v87
    %91 = vmatprep.subr.mxu0 %v78
    %92 = vmatpush1.msra.mxu0 %v77
    %93 = vmatprep.subr.mxu0 %v76
    %94 = vmatpush1.msra.mxu0 %v75
    %95 = vmatprep.subr.mxu0 %v74
    %96 = vmatpush1.msra.mxu0 %v73
    %97 = vmatprep.subr.mxu0 %v72
    %98 = vmatpush1.msra.mxu0 %v71
    %99 = vmatprep.subr.mxu0 %v70
    %100 = vmatpush1.msra.mxu0 %v69
    %101 = vmatprep.subr.mxu0 %v68
    %102 = vmatpush1.msra.mxu0 %v67
    %103 = vmatprep.subr.mxu0 %v66
    %104 = vmatpush1.msra.mxu0 %v65
    %105 = vmatprep.subr.mxu0 %v64
    %106 = vmatpush1.msra.mxu0 %v63
    %107 = vmatprep.subr.mxu0 %v62
    %108 = vmatpush1.msra.mxu0 %v61
    %109 = vmatprep.subr.mxu0 %v60
    %110 = vmatpush1.msra.mxu0 %v59
    %111 = vmatprep.subr.mxu0 %v58
    %112 = vmatpush1.msra.mxu0 %v57
    %113 = vmatprep.subr.mxu0 %v56
    %114 = vmatpush1.msra.mxu0 %v55
    %115 = vmatprep.subr.mxu0 %v54
    %116 = vmatpush1.msra.mxu0 %v53
    %117 = vmatprep.subr.mxu0 %v52
    %118 = vmatpush1.msra.mxu0 %v51
    %119 = vmatprep.subr.mxu0 %v50
    %120 = vmatpush1.msra.mxu0 %v49
    %121 = vmatprep.subr.mxu0 %v48
    %122 = vmatpush1.msra.mxu0 %v47
    %123 = vmatprep.subr.mxu0 0.0
    %124 = vmatpush2.msra.mxu0 0.0
    %125 = vmatprep.subr.mxu0 0.0
    %126 = vmatpush2.msra.mxu0 0.0
    %127 = vmatprep.subr.mxu0 0.0
    %128 = vmatpush2.msra.mxu0 0.0
    %129 = vmatprep.subr.mxu0 0.0
    %130 = vmatpush2.msra.mxu0 0.0
    %131 = vmatprep.subr.mxu0 0.0
    %132 = vmatpush2.msra.mxu0 0.0
    %133 = vmatprep.subr.mxu0 0.0
    %134 = vmatpush2.msra.mxu0 0.0
    %135 = vmatprep.subr.mxu0 0.0
    %136 = vmatpush2.msra.mxu0 0.0
    %137 = vmatprep.subr.mxu0 0.0
    %138 = vmatpush2.msra.mxu0 0.0
    %139 = vmatprep.subr.mxu0 0.0
    %140 = vmatpush2.msra.mxu0 0.0
    %141 = vmatprep.subr.mxu0 0.0
    %142 = vmatpush2.msra.mxu0 0.0
    %143 = vmatprep.subr.mxu0 0.0
    %144 = vmatpush2.msra.mxu0 0.0
    %145 = vmatprep.subr.mxu0 0.0
    %146 = vmatpush2.msra.mxu0 0.0
    %147 = vmatprep.subr.mxu0 0.0
    %148 = vmatpush2.msra.mxu0 0.0
    %149 = vmatprep.subr.mxu0 0.0
    %150 = vmatpush2.msra.mxu0 0.0
    %151 = vmatprep.subr.mxu0 0.0
    %152 = vmatpush2.msra.mxu0 0.0
    %153 = vmatprep.subr.mxu0 0.0
    %154 = vmatpush2.msra.mxu0 0.0
    %155 = vmatprep.mubr.f32.mxu0 0.0
    %156 = vmatmul.mubr.f32.gmra.mxu0 %v43
    %v157 = vpop.f32.mrf.mxu0
    %v158 = vadd.f32 %v84, %v157
    %v159 = vpop.f32.mrf.mxu0
    %v160 = vadd.f32 %v88, %v159
    %161 = vmatprep.mubr.f32.mxu0 0.0
    %162 = vmatmul.mubr.f32.gmra.mxu0 %v44
    %v163 = vpop.f32.mrf.mxu0
    %v164 = vadd.f32 %v84, %v163
    %v165 = vpop.f32.mrf.mxu0
    %v166 = vadd.f32 %v88, %v165
    %167 = vmatprep.mubr.f32.mxu0 0.0
    %168 = vmatmul.mubr.f32.gmra.mxu0 %v45
    %v169 = vpop.f32.mrf.mxu0
    %v170 = vadd.f32 %v84, %v169
    %v171 = vpop.f32.mrf.mxu0
    %v172 = vadd.f32 %v88, %v171
    %173 = vmatprep.mubr.f32.mxu0 0.0
    %174 = vmatmul.mubr.f32.gmra.mxu0 %v46
    %v175 = vpop.f32.mrf.mxu0
    %v176 = vadd.f32 %v84, %v175
    %v177 = vpop.f32.mrf.mxu0
    %v178 = vadd.f32 %v88, %v177
    %179 = vdwg.mxu0
    %180 = vst [vmem:[#allocation7] sm:$0xff] %v158
    %181 = vst [vmem:[#allocation7 + $0x8] sm:$0xff] %v160
    %182 = vst [vmem:[#allocation7 + $0x10] sm:$0xff] %v164
    %183 = vst [vmem:[#allocation7 + $0x18] sm:$0xff] %v166
    %184 = vst [vmem:[#allocation7 + $0x20] sm:$0xff] %v170
    %185 = vst [vmem:[#allocation7 + $0x28] sm:$0xff] %v172
    %186 = vst [vmem:[#allocation7 + $0x30] sm:$0xff] %v176
    %187 = vst [vmem:[#allocation7 + $0x38] sm:$0xff] %v178
    // Predicated region
    $region22: #{tpu_custom_call.1} parent=1 // pred_check
      _
    $region23: #{tpu_custom_call.1} parent=1 // pred_check_branch
      %189 = sbr.rel (0) target = $region25
    $region24: #{tpu_custom_call.1} parent=1 // pred_region
      %s191 = ssub.s32 1024, 1024
      %192 = vsyncadd [#allocation4], %s191
      %s193 = sshll.u32 [#allocation7], 4
      %s194 = int_to_ptr.vmem [resolvable:$true] %s193
      %199 = dma.vmem_to_hbm [thread:$0]  %s194, 1024, %s3, [#allocation4], 256, 256, 16
    $region25: #{tpu_custom_call.1} parent=1 // pred_fallthru
      _
    // Predicated region
    $region26: #{tpu_custom_call.1} parent=1 // pred_check
      _
    $region27: #{tpu_custom_call.1} parent=1 // pred_check_branch
      %201 = sbr.rel (0) target = $region29
    $region28: #{tpu_custom_call.1} parent=1 // pred_region
      %202 = dma.done [#allocation4], 1024
    $region29: #{tpu_custom_call.1} parent=1 // pred_fallthru
      _
    %203 = vsyncpa [#allocation3], 1
    %204 = vsyncpa [#allocation6], 1
    %205 = vsyncpa [#allocation4], 1

</llo_original>
